<compile_context>
chip_gen: v6e
topology: v6e:2x2x1
jax: 0.10.0
libtpu: 0.0.40
codegen_flags: <defaults>
</compile_context>

<pallas_src>
import functools
import math

import jax
import jax.numpy as jnp
from jax import lax
from jax.experimental import pallas as pl
from jax.experimental.pallas import tpu as pltpu


def _round_up(x, m):
    return (x + m - 1) // m * m


# ------------------------------ Pallas kernels ------------------------------ #
def _conv_stats_kernel(x_ref, w_ref, sum_ref, sq_ref, *, p_total, tile_p,
                       lane_w, masked):
    """Pass 1: 1x1-conv tile + per-channel sum / sum-of-squares partials.

    x_ref  : (Cin, tile_p)   f32 input tile (spatial positions on lanes)
    w_ref  : (Cout, Cin)     bf16 weights (grid-invariant block)
    sum_ref: (Cout, lane_w)  f32 accumulator (resident across the P axis)
    sq_ref : (Cout, lane_w)  f32 accumulator (resident across the P axis)
    """
    j = pl.program_id(1)

    @pl.when(j == 0)
    def _():
        sum_ref[...] = jnp.zeros_like(sum_ref)
        sq_ref[...] = jnp.zeros_like(sq_ref)

    xb = x_ref[...].astype(jnp.bfloat16)                       # (Cin, tp)
    z = jnp.dot(w_ref[...], xb,
                preferred_element_type=jnp.float32)            # (Cout, tp)

    if masked:
        # Ragged last spatial tile: zero out-of-range columns before the
        # statistics accumulation (jnp.where also kills garbage NaN/Inf).
        col = j * tile_p + lax.broadcasted_iota(jnp.int32, z.shape, 1)
        z = jnp.where(col < p_total, z, 0.0)

    zz = z * z
    tp = z.shape[1]
    if lane_w == 1:
        s = jnp.sum(z, axis=1, keepdims=True)
        q = jnp.sum(zz, axis=1, keepdims=True)
    else:
        # Fold the tile down to 128 lane-parallel partials with aligned VPU
        # adds; the final cross-lane reduce happens once, in the wrapper.
        s = z[:, 0:lane_w]
        q = zz[:, 0:lane_w]
        for k in range(1, tp // lane_w):
            s = s + z[:, k * lane_w:(k + 1) * lane_w]
            q = q + zz[:, k * lane_w:(k + 1) * lane_w]
    sum_ref[...] += s
    sq_ref[...] += q


def _conv_bn_kernel(x_ref, w_ref, scale_ref, shift_ref, o_ref):
    """Pass 2: recompute the 1x1 conv and apply BN folded to y*scale+shift.

    x_ref    : (Cin, tile_p)  f32
    w_ref    : (Cout, Cin)    bf16
    scale_ref: (Cout, 1)      f32
    shift_ref: (Cout, 1)      f32
    o_ref    : (Cout, tile_p) f32   -> written straight into the NCHW output
    """
    xb = x_ref[...].astype(jnp.bfloat16)
    z = jnp.dot(w_ref[...], xb, preferred_element_type=jnp.float32)
    o_ref[...] = z * scale_ref[...] + shift_ref[...]


# --------------------------------- wrapper ---------------------------------- #
def _vmem_budgets():
    """(working-set budget, vmem_limit_bytes), derived from chip VMEM size."""
    cap = 64 * 1024 * 1024                       # conservative fallback (v7x)
    try:
        cap = int(pltpu.get_tpu_info().vmem_capacity_bytes)
    except Exception:
        pass
    working = min(cap // 2, 48 * 1024 * 1024)    # v7x: 32 MiB, v5e/v6e: 48 MiB
    limit = min(cap * 3 // 4, 100 * 1024 * 1024)  # v7x: 48 MiB, v5e/v6e: 96 MiB
    return working, limit


def _pick_tile_p(p, cin, cout, budget):
    """Largest spatial tile (multiple of 128, or the full P) fitting budget."""
    cin8 = max(_round_up(cin, 8), 8)
    cout8 = max(_round_up(cout, 8), 8)

    def need(tp):
        return (2 * cin8 * tp * 4        # double-buffered f32 x tile
                + 2 * cout8 * tp * 4     # double-buffered f32 out tile (pass 2)
                + 2 * cout8 * tp * 4     # z + elementwise temporaries
                + 4 * cout8 * 128 * 4    # sum/sq accumulator blocks
                + 2 * cout8 * cin8 * 2)  # weights

    if need(p) <= budget:
        return p                          # whole image in one block
    for tp in (16384, 8192, 4096, 2048, 1024, 512, 256, 128):
        if tp < p and need(tp) <= budget:
            return tp
    return 128


def channelcat_forward(x_nchw, w, b, gamma, beta, *, eps=1e-5, tile_p=None):
    """Equivalent of channelcat.forward (Conv1x1 -> BN, training-mode stats).

    Input / output are NCHW like PyTorch. `b` (the conv bias) is accepted for
    API parity but is mathematically a no-op under the following BatchNorm.
    """
    del b  # cancels exactly: BN subtracts the batch mean of (conv + bias)

    n, cin, h, wsp = x_nchw.shape
    cout = w.shape[0]
    p = h * wsp

    budget, vmem_limit = _vmem_budgets()
    tp = int(tile_p) if tile_p is not None else _pick_tile_p(p, cin, cout, budget)
    tp = min(tp, p)
    if tp < p:
        assert tp % 128 == 0, "spatial tile must be a multiple of 128 (or == H*W)"
    n_pt = pl.cdiv(p, tp)
    ragged = (p % tp) != 0
    lane_w = 128 if (tp % 128 == 0) else 1      # lane width of stat partials

    # Free views / tiny casts only — no full-array HBM copies in the wrapper.
    x3 = x_nchw.reshape(n, cin, p)                       # NCHW view, f32
    wmat = w.reshape(cout, cin).astype(jnp.bfloat16)     # (Cout, Cin), tiny

    # ------------------------- pass 1: conv + stats ------------------------- #
    kern1 = functools.partial(_conv_stats_kernel, p_total=p, tile_p=tp,
                              lane_w=lane_w, masked=ragged)
    cost1 = pl.CostEstimate(
        flops=2 * n * p * cin * cout + 3 * n * p * cout,
        transcendentals=0,
        bytes_accessed=n * p * cin * 4 + cout * cin * 2
        + 2 * n * cout * lane_w * 4)

    sum_p, sq_p = pl.pallas_call(
        kern1,
        out_shape=(jax.ShapeDtypeStruct((n, cout, lane_w), jnp.float32),
                   jax.ShapeDtypeStruct((n, cout, lane_w), jnp.float32)),
        grid=(n, n_pt),
        in_specs=[pl.BlockSpec((None, cin, tp), lambda i, j: (i, 0, j)),
                  pl.BlockSpec((cout, cin), lambda i, j: (0, 0))],
        out_specs=(pl.BlockSpec((None, cout, lane_w), lambda i, j: (i, 0, 0)),
                   pl.BlockSpec((None, cout, lane_w), lambda i, j: (i, 0, 0))),
        compiler_params=pltpu.CompilerParams(
            dimension_semantics=("parallel", "arbitrary"),
            vmem_limit_bytes=vmem_limit),
        cost_estimate=cost1,
    )(x3, wmat)

    # Per-channel batch statistics (biased variance, nn.BatchNorm2d training).
    # NOTE: E[z^2]-E[z]^2 in f32 can lose precision when |mean| >> std and M
    # is huge; acceptable here (single-pass BN kernels use the same formula).
    m_total = float(n * p)
    ch_sum = jnp.sum(sum_p, axis=(0, 2))
    ch_sq = jnp.sum(sq_p, axis=(0, 2))
    mean = ch_sum / m_total
    var = jnp.maximum(ch_sq / m_total - mean * mean, 0.0)
    scale = (gamma * lax.rsqrt(var + eps)).astype(jnp.float32)   # (Cout,)
    shift = (beta - mean * scale).astype(jnp.float32)            # (Cout,)

    # ---------------- pass 2: recompute conv + apply BN --------------------- #
    cost2 = pl.CostEstimate(
        flops=2 * n * p * cin * cout + 2 * n * p * cout,
        transcendentals=0,
        bytes_accessed=n * p * cin * 4 + cout * cin * 2 + n * p * cout * 4)

    out3 = pl.pallas_call(
        _conv_bn_kernel,
        out_shape=jax.ShapeDtypeStruct((n, cout, p), jnp.float32),
        grid=(n, n_pt),
        in_specs=[pl.BlockSpec((None, cin, tp), lambda i, j: (i, 0, j)),
                  pl.BlockSpec((cout, cin), lambda i, j: (0, 0)),
                  pl.BlockSpec((cout, 1), lambda i, j: (0, 0)),
                  pl.BlockSpec((cout, 1), lambda i, j: (0, 0))],
        out_specs=pl.BlockSpec((None, cout, tp), lambda i, j: (i, 0, j)),
        compiler_params=pltpu.CompilerParams(
            dimension_semantics=("parallel", "parallel"),
            vmem_limit_bytes=vmem_limit),
        cost_estimate=cost2,
    )(x3, wmat, scale.reshape(cout, 1), shift.reshape(cout, 1))

    return out3.reshape(n, cout, h, wsp)     # free view: already NCHW


# -------------------------------- reference --------------------------------- #
def _ref_forward(x_nchw, w, b, gamma, beta, *, eps=1e-5, mxu_bf16=True):
    """Faithful Conv1x1(+bias) -> BN(train) reference. `mxu_bf16=True` applies
    the same bf16 operand cast the kernel uses (f32 accumulation)."""
    n, cin, h, wsp = x_nchw.shape
    cout = w.shape[0]
    x2d = jnp.transpose(x_nchw, (0, 2, 3, 1)).reshape(-1, cin)
    wmat = jnp.transpose(w.reshape(cout, cin), (1, 0))
    if mxu_bf16:
        y = jnp.dot(x2d.astype(jnp.bfloat16), wmat.astype(jnp.bfloat16),
                    preferred_element_type=jnp.float32)
    else:
        y = jnp.dot(x2d, wmat)
    y = y + b
    mean = jnp.mean(y, axis=0, keepdims=True)
    var = jnp.mean(jnp.square(y - mean), axis=0, keepdims=True)   # biased
    y = (y - mean) * lax.rsqrt(var + eps) * gamma + beta
    return jnp.transpose(y.reshape(n, h, wsp, cout), (0, 3, 1, 2))


# ----------------------------------- main ------------------------------------ #
if __name__ == "__main__":
    key = jax.random.PRNGKey(0)
    inc, outc = 4, 8
    N, H, W = 2, 16, 16

    kx, kw, kb, kg, kbe = jax.random.split(key, 5)
    x = jax.random.normal(kx, (N, inc, H, W), jnp.float32)            # NCHW

    bound = 1.0 / math.sqrt(inc * 1 * 1)                              # Conv2d k=1 init
    w = jax.random.uniform(kw, (outc, inc, 1, 1), jnp.float32, -bound, bound)
    b = jax.random.uniform(kb, (outc,), jnp.float32, -bound, bound)
    gamma = 1.0 + 0.1 * jax.random.normal(kg, (outc,), jnp.float32)
    beta = 0.1 * jax.random.normal(kbe, (outc,), jnp.float32)

    ref_bf16 = jax.block_until_ready(
        _ref_forward(x, w, b, gamma, beta, mxu_bf16=True))
    ref_f32 = jax.block_until_ready(
        _ref_forward(x, w, b, gamma, beta, mxu_bf16=False))

    # tile_p=128 -> grid (N=2, 2 spatial tiles): exercises the parallel batch
    # axis, the resident stat accumulators and the pl.when init path.
    fwd_small_tile = jax.jit(functools.partial(channelcat_forward, tile_p=128))
    out = jax.block_until_ready(fwd_small_tile(x, w, b, gamma, beta))
    assert out.shape == (N, outc, H, W), out.shape
    if not jnp.allclose(out, ref_bf16, atol=1e-3, rtol=1e-3):
        raise AssertionError("Pallas (tile_p=128) != bf16-matmul reference")
    if not jnp.allclose(out, ref_f32, atol=1e-1, rtol=1e-1):
        raise AssertionError("Pallas (tile_p=128) diverges from f32 reference")

    # Default (auto) tiling: whole image per block, single P step.
    fwd_auto = jax.jit(channelcat_forward)
    out2 = jax.block_until_ready(fwd_auto(x, w, b, gamma, beta))
    if not jnp.allclose(out2, ref_bf16, atol=1e-3, rtol=1e-3):
        raise AssertionError("Pallas (auto tile) != bf16-matmul reference")

    print("KERNEL_OK")
</pallas_src>

<mosaic_0001>
module attributes {stable_mosaic.version = 11 : i64} {
  func.func @_conv_stats_kernel(%arg0: i32, %arg1: i32, %arg2: memref<1x4x128xf32, #tpu.memory_space<vmem>>, %arg3: memref<8x4xbf16, #tpu.memory_space<vmem>>, %arg4: memref<1x8x128xf32, #tpu.memory_space<vmem>>, %arg5: memref<1x8x128xf32, #tpu.memory_space<vmem>>) attributes {dimension_semantics = [#tpu.dimension_semantics<parallel>, #tpu.dimension_semantics<arbitrary>], iteration_bounds = array<i64: 2, 2>, scalar_prefetch = 0 : i64, scratch_operands = 0 : i64, tpu.core_type = #tpu.core_type<tc>, window_params = [{transform_indices = @transform_0, window_bounds = array<i64: 1, 4, 128>}, {pipeline_mode = #tpu.pipeline_mode<synchronous>, transform_indices = @transform_1, window_bounds = array<i64: 8, 4>}, {transform_indices = @transform_2, window_bounds = array<i64: 1, 8, 128>}, {transform_indices = @transform_3, window_bounds = array<i64: 1, 8, 128>}]} {
    %c0_i32 = arith.constant 0 : i32
    %0 = arith.cmpi eq, %arg1, %c0_i32 : i32
    %1 = arith.extui %0 : i1 to i32
    %c0_i32_0 = arith.constant 0 : i32
    %2 = arith.cmpi ne, %1, %c0_i32_0 : i32
    scf.if %2 {
      %cst_17 = arith.constant 0.000000e+00 : f32
      %21 = vector.broadcast %cst_17 : f32 to vector<8x128xf32>
      %c0_18 = arith.constant 0 : index
      %c0_19 = arith.constant 0 : index
      %c0_20 = arith.constant 0 : index
      %22 = vector.load %arg4[%c0_18, %c0_19, %c0_20] : memref<1x8x128xf32, #tpu.memory_space<vmem>>, vector<1x8x128xf32>
      %23 = vector.shape_cast %22 : vector<1x8x128xf32> to vector<8x128xf32>
      %24 = vector.shape_cast %21 : vector<8x128xf32> to vector<1x8x128xf32>
      tpu.vector_store %arg4[%c0_18, %c0_19, %c0_20], %24 {strides = array<i32>} : memref<1x8x128xf32, #tpu.memory_space<vmem>>, vector<1x8x128xf32>,
      %cst_21 = arith.constant 0.000000e+00 : f32
      %25 = vector.broadcast %cst_21 : f32 to vector<8x128xf32>
      %c0_22 = arith.constant 0 : index
      %c0_23 = arith.constant 0 : index
      %c0_24 = arith.constant 0 : index
      %26 = vector.load %arg5[%c0_22, %c0_23, %c0_24] : memref<1x8x128xf32, #tpu.memory_space<vmem>>, vector<1x8x128xf32>
      %27 = vector.shape_cast %26 : vector<1x8x128xf32> to vector<8x128xf32>
      %28 = vector.shape_cast %25 : vector<8x128xf32> to vector<1x8x128xf32>
      tpu.vector_store %arg5[%c0_22, %c0_23, %c0_24], %28 {strides = array<i32>} : memref<1x8x128xf32, #tpu.memory_space<vmem>>, vector<1x8x128xf32>,
    } else {
    }
    %c0 = arith.constant 0 : index
    %c0_1 = arith.constant 0 : index
    %c0_2 = arith.constant 0 : index
    %3 = vector.load %arg2[%c0, %c0_1, %c0_2] : memref<1x4x128xf32, #tpu.memory_space<vmem>>, vector<1x4x128xf32>
    %4 = vector.shape_cast %3 : vector<1x4x128xf32> to vector<4x128xf32>
    %5 = arith.truncf %4 : vector<4x128xf32> to vector<4x128xbf16>
    %c0_3 = arith.constant 0 : index
    %c0_4 = arith.constant 0 : index
    %6 = vector.load %arg3[%c0_3, %c0_4] : memref<8x4xbf16, #tpu.memory_space<vmem>>, vector<8x4xbf16>
    %cst = arith.constant dense<0.000000e+00> : vector<8x128xf32>
    %7 = tpu.matmul %6, %5, %cst {dimension_numbers = #tpu.dot_dimension_numbers<[1], [0], [0], [1], [0, 0, 1, 1], [], []>} : vector<8x4xbf16>, vector<4x128xbf16>, vector<8x128xf32> -> vector<8x128xf32>
    %8 = arith.mulf %7, %7 : vector<8x128xf32>
    %c0_5 = arith.constant 0 : index
    %c0_6 = arith.constant 0 : index
    %c0_7 = arith.constant 0 : index
    %9 = vector.load %arg4[%c0_5, %c0_6, %c0_7] : memref<1x8x128xf32, #tpu.memory_space<vmem>>, vector<1x8x128xf32>
    %10 = vector.shape_cast %9 : vector<1x8x128xf32> to vector<8x128xf32>
    %11 = arith.addf %10, %7 : vector<8x128xf32>
    %c0_8 = arith.constant 0 : index
    %c0_9 = arith.constant 0 : index
    %c0_10 = arith.constant 0 : index
    %12 = vector.load %arg4[%c0_8, %c0_9, %c0_10] : memref<1x8x128xf32, #tpu.memory_space<vmem>>, vector<1x8x128xf32>
    %13 = vector.shape_cast %12 : vector<1x8x128xf32> to vector<8x128xf32>
    %14 = vector.shape_cast %11 : vector<8x128xf32> to vector<1x8x128xf32>
    tpu.vector_store %arg4[%c0_8, %c0_9, %c0_10], %14 {strides = array<i32>} : memref<1x8x128xf32, #tpu.memory_space<vmem>>, vector<1x8x128xf32>,
    %c0_11 = arith.constant 0 : index
    %c0_12 = arith.constant 0 : index
    %c0_13 = arith.constant 0 : index
    %15 = vector.load %arg5[%c0_11, %c0_12, %c0_13] : memref<1x8x128xf32, #tpu.memory_space<vmem>>, vector<1x8x128xf32>
    %16 = vector.shape_cast %15 : vector<1x8x128xf32> to vector<8x128xf32>
    %17 = arith.addf %16, %8 : vector<8x128xf32>
    %c0_14 = arith.constant 0 : index
    %c0_15 = arith.constant 0 : index
    %c0_16 = arith.constant 0 : index
    %18 = vector.load %arg5[%c0_14, %c0_15, %c0_16] : memref<1x8x128xf32, #tpu.memory_space<vmem>>, vector<1x8x128xf32>
    %19 = vector.shape_cast %18 : vector<1x8x128xf32> to vector<8x128xf32>
    %20 = vector.shape_cast %17 : vector<8x128xf32> to vector<1x8x128xf32>
    tpu.vector_store %arg5[%c0_14, %c0_15, %c0_16], %20 {strides = array<i32>} : memref<1x8x128xf32, #tpu.memory_space<vmem>>, vector<1x8x128xf32>,
    return
  }
  func.func @transform_0(%arg0: i32, %arg1: i32) -> (i32, i32, i32) {
    %c0_i32 = arith.constant 0 : i32
    %c0_i32_0 = arith.constant 0 : i32
    return %arg0, %c0_i32, %arg1 : i32, i32, i32
  }
  func.func @transform_1(%arg0: i32, %arg1: i32) -> (i32, i32) {
    %c0_i32 = arith.constant 0 : i32
    %c0_i32_0 = arith.constant 0 : i32
    %c0_i32_1 = arith.constant 0 : i32
    return %c0_i32, %c0_i32_0 : i32, i32
  }
  func.func @transform_2(%arg0: i32, %arg1: i32) -> (i32, i32, i32) {
    %c0_i32 = arith.constant 0 : i32
    %c0_i32_0 = arith.constant 0 : i32
    %c0_i32_1 = arith.constant 0 : i32
    return %arg0, %c0_i32, %c0_i32_0 : i32, i32, i32
  }
  func.func @transform_3(%arg0: i32, %arg1: i32) -> (i32, i32, i32) {
    %c0_i32 = arith.constant 0 : i32
    %c0_i32_0 = arith.constant 0 : i32
    %c0_i32_1 = arith.constant 0 : i32
    return %arg0, %c0_i32, %c0_i32_0 : i32, i32, i32
  }
}

module attributes {stable_mosaic.version = 11 : i64} {
  func.func @_conv_bn_kernel(%arg0: i32, %arg1: i32, %arg2: memref<1x4x128xf32, #tpu.memory_space<vmem>>, %arg3: memref<8x4xbf16, #tpu.memory_space<vmem>>, %arg4: memref<8x1xf32, #tpu.memory_space<vmem>>, %arg5: memref<8x1xf32, #tpu.memory_space<vmem>>, %arg6: memref<1x8x128xf32, #tpu.memory_space<vmem>>) attributes {dimension_semantics = [#tpu.dimension_semantics<parallel>, #tpu.dimension_semantics<parallel>], iteration_bounds = array<i64: 2, 2>, scalar_prefetch = 0 : i64, scratch_operands = 0 : i64, tpu.core_type = #tpu.core_type<tc>, window_params = [{transform_indices = @transform_0, window_bounds = array<i64: 1, 4, 128>}, {pipeline_mode = #tpu.pipeline_mode<synchronous>, transform_indices = @transform_1, window_bounds = array<i64: 8, 4>}, {pipeline_mode = #tpu.pipeline_mode<synchronous>, transform_indices = @transform_2, window_bounds = array<i64: 8, 1>}, {pipeline_mode = #tpu.pipeline_mode<synchronous>, transform_indices = @transform_3, window_bounds = array<i64: 8, 1>}, {transform_indices = @transform_4, window_bounds = array<i64: 1, 8, 128>}]} {
    %c0 = arith.constant 0 : index
    %c0_0 = arith.constant 0 : index
    %c0_1 = arith.constant 0 : index
    %0 = vector.load %arg2[%c0, %c0_0, %c0_1] : memref<1x4x128xf32, #tpu.memory_space<vmem>>, vector<1x4x128xf32>
    %1 = vector.shape_cast %0 : vector<1x4x128xf32> to vector<4x128xf32>
    %2 = arith.truncf %1 : vector<4x128xf32> to vector<4x128xbf16>
    %c0_2 = arith.constant 0 : index
    %c0_3 = arith.constant 0 : index
    %3 = vector.load %arg3[%c0_2, %c0_3] : memref<8x4xbf16, #tpu.memory_space<vmem>>, vector<8x4xbf16>
    %cst = arith.constant dense<0.000000e+00> : vector<8x128xf32>
    %4 = tpu.matmul %3, %2, %cst {dimension_numbers = #tpu.dot_dimension_numbers<[1], [0], [0], [1], [0, 0, 1, 1], [], []>} : vector<8x4xbf16>, vector<4x128xbf16>, vector<8x128xf32> -> vector<8x128xf32>
    %c0_4 = arith.constant 0 : index
    %c0_5 = arith.constant 0 : index
    %5 = vector.load %arg4[%c0_4, %c0_5] : memref<8x1xf32, #tpu.memory_space<vmem>>, vector<8x1xf32>
    %6 = vector.broadcast %5 : vector<8x1xf32> to vector<8x128xf32>
    %7 = arith.mulf %4, %6 : vector<8x128xf32>
    %c0_6 = arith.constant 0 : index
    %c0_7 = arith.constant 0 : index
    %8 = vector.load %arg5[%c0_6, %c0_7] : memref<8x1xf32, #tpu.memory_space<vmem>>, vector<8x1xf32>
    %9 = vector.broadcast %8 : vector<8x1xf32> to vector<8x128xf32>
    %10 = arith.addf %7, %9 : vector<8x128xf32>
    %c0_8 = arith.constant 0 : index
    %c0_9 = arith.constant 0 : index
    %c0_10 = arith.constant 0 : index
    %11 = vector.load %arg6[%c0_8, %c0_9, %c0_10] : memref<1x8x128xf32, #tpu.memory_space<vmem>>, vector<1x8x128xf32>
    %12 = vector.shape_cast %11 : vector<1x8x128xf32> to vector<8x128xf32>
    %13 = vector.shape_cast %10 : vector<8x128xf32> to vector<1x8x128xf32>
    tpu.vector_store %arg6[%c0_8, %c0_9, %c0_10], %13 {strides = array<i32>} : memref<1x8x128xf32, #tpu.memory_space<vmem>>, vector<1x8x128xf32>,
    return
  }
  func.func @transform_0(%arg0: i32, %arg1: i32) -> (i32, i32, i32) {
    %c0_i32 = arith.constant 0 : i32
    %c0_i32_0 = arith.constant 0 : i32
    return %arg0, %c0_i32, %arg1 : i32, i32, i32
  }
  func.func @transform_1(%arg0: i32, %arg1: i32) -> (i32, i32) {
    %c0_i32 = arith.constant 0 : i32
    %c0_i32_0 = arith.constant 0 : i32
    %c0_i32_1 = arith.constant 0 : i32
    return %c0_i32, %c0_i32_0 : i32, i32
  }
  func.func @transform_2(%arg0: i32, %arg1: i32) -> (i32, i32) {
    %c0_i32 = arith.constant 0 : i32
    %c0_i32_0 = arith.constant 0 : i32
    %c0_i32_1 = arith.constant 0 : i32
    return %c0_i32, %c0_i32_0 : i32, i32
  }
  func.func @transform_3(%arg0: i32, %arg1: i32) -> (i32, i32) {
    %c0_i32 = arith.constant 0 : i32
    %c0_i32_0 = arith.constant 0 : i32
    %c0_i32_1 = arith.constant 0 : i32
    return %c0_i32, %c0_i32_0 : i32, i32
  }
  func.func @transform_4(%arg0: i32, %arg1: i32) -> (i32, i32, i32) {
    %c0_i32 = arith.constant 0 : i32
    %c0_i32_0 = arith.constant 0 : i32
    return %arg0, %c0_i32, %arg1 : i32, i32, i32
  }
}

</mosaic_0001>

<llo_original>
// kernel: channelcat_forward.2
$region0: #{channelcat_forward.2}
  #allocation0 [shape = 'u32[]', space=smem, size = 0x4, offset = 0x4, fixed_abs, tag = 'smem constant byte address 0x4 - core index']
  #allocation1 [shape = 'u32[144,128]{1,0:T(1,128)}', space=vmem, size = 0x12000, scoped, tag = 'internal scratch']
  %s0 = inlined_call_operand.vmem [shape: f32[2,4,256], index: 0, kind: input, shape index: {}]
  %s1 = inlined_call_operand.vmem [shape: bf16[8,4], index: 1, kind: input, shape index: {}]
  %s2 = inlined_call_operand.vmem [shape: f32[2,8,128], index: 2, kind: output, shape index: {0}]
  %s3 = inlined_call_operand.vmem [shape: f32[2,8,128], index: 3, kind: output, shape index: {1}]
  %4 = xla_tuple %s2, %s3
  %s5 = sld [smem:[#allocation0]]
  $region53: #{channelcat_forward.2} parent=0
    _
  %s7 = ssub.s32 1, %s5
  %s8 = scalar_select 0, %s7, %s5
  loop: start=0, step=1, limit=6
  $region2: #{channelcat_forward.2} parent=0 // loop_pre_header
    _
  $region3: #{channelcat_forward.2} parent=0 // loop_header
    %s10 = sphi 0, %s14
    %p11 = scmp.ge.s32.totalorder %s10, 6
    %s17 = sphi 0, %s29
    %s18 = sphi 0, %s25
    %s19 = sphi 0, %s17
    %s20 = sphi 0, %s18
    %s21 = sphi 0, %s19
    %s22 = sphi 0, %s20
    %s34 = sphi 0, %s36
    %s37 = sphi 0, %s34
    %s38 = sphi 0, %s37
    %s54 = sphi 0, %s38
    %s58 = sphi 0, %s58
    %s60 = sphi 0, %s58
    %s61 = sphi 0, %s60
    %s75 = sphi 0, %s61
    %s81 = sphi 0, %s83
    %s84 = sphi 0, %s81
    %s85 = sphi 0, %s84
    %s101 = sphi 0, %s85
    %s107 = sphi 0, %s109
    %s110 = sphi 0, %s107
    %s111 = sphi 0, %s110
    %s127 = sphi 0, %s111
  $region4: #{channelcat_forward.2} parent=0 // loop_header_branch
    %13 = sbr.rel (%p11) target = $region8
  $region5: #{channelcat_forward.2} parent=0 // loop_body
    %s15 = ssub.s32 %s10, 1
    %s16 = ssub.s32 %s10, 2
    %s23 = sadd.s32 1, %s18
    %p24 = scmp.ge.s32.totalorder %s23, 2
    %s25 = scalar_select %p24, 0, %s23
    %s26 = sadd.s32 1, %s17
    %s27 = scalar_select %p24, %s26, %s17
    %p28 = scmp.ge.s32.totalorder %s27, 2
    %s29 = scalar_select %p28, 0, %s27
    %s30 = ssub.s32 %s17, %s29
    %s31 = ssub.s32 %s18, %s25
    %s32 = sor.u32 %s30, %s31
    %p33 = scmp.eq.s32.totalorder %s32, 0
    %s35 = sadd.s32 %s34, 1
    %s36 = scalar_select %p33, %s34, %s35
    %p39 = pneg %p33
    %p40 = scmp.eq.s32.totalorder %s10, 3
    %p41 = por %p39, %p40
    %p42 = scmp.ne.s32.totalorder %s34, %s37
    %p43 = scmp.eq.s32.totalorder %s10, 0
    %p44 = por %p42, %p43
    %p45 = scmp.ne.s32.totalorder %s34, %s37
    %p46 = scmp.eq.s32.totalorder %s15, 3
    %p47 = por %p45, %p46
    %p48 = scmp.ne.s32.totalorder %s37, %s38
    %p49 = scmp.eq.s32.totalorder %s15, 0
    %p50 = por %p48, %p49
    %p51 = scmp.ne.s32.totalorder %s37, %s38
    %p52 = scmp.eq.s32.totalorder %s16, 3
    %p53 = por %p51, %p52
    %p55 = scmp.ne.s32.totalorder %s38, %s54
    %p56 = scmp.eq.s32.totalorder %s16, 0
    %p57 = por %p55, %p56
    %s59 = sadd.s32 %s58, 1
    %p62 = scmp.eq.s32.totalorder %s10, 3
    %p63 = scmp.ne.s32.totalorder %s58, %s60
    %p64 = scmp.eq.s32.totalorder %s10, 0
    %p65 = por %p63, %p64
    %p66 = scmp.ne.s32.totalorder %s58, %s60
    %p67 = scmp.eq.s32.totalorder %s15, 3
    %p68 = por %p66, %p67
    %p69 = scmp.ne.s32.totalorder %s60, %s61
    %p70 = scmp.eq.s32.totalorder %s15, 0
    %p71 = por %p69, %p70
    %p72 = scmp.ne.s32.totalorder %s60, %s61
    %p73 = scmp.eq.s32.totalorder %s16, 3
    %p74 = por %p72, %p73
    %p76 = scmp.ne.s32.totalorder %s61, %s75
    %p77 = scmp.eq.s32.totalorder %s16, 0
    %p78 = por %p76, %p77
    %s79 = ssub.s32 %s17, %s29
    %p80 = scmp.eq.s32.totalorder %s79, 0
    %s82 = sadd.s32 %s81, 1
    %s83 = scalar_select %p80, %s81, %s82
    %p86 = pneg %p80
    %p87 = scmp.eq.s32.totalorder %s10, 3
    %p88 = por %p86, %p87
    %p89 = scmp.ne.s32.totalorder %s81, %s84
    %p90 = scmp.eq.s32.totalorder %s10, 0
    %p91 = por %p89, %p90
    %p92 = scmp.ne.s32.totalorder %s81, %s84
    %p93 = scmp.eq.s32.totalorder %s15, 3
    %p94 = por %p92, %p93
    %p95 = scmp.ne.s32.totalorder %s84, %s85
    %p96 = scmp.eq.s32.totalorder %s15, 0
    %p97 = por %p95, %p96
    %p98 = scmp.ne.s32.totalorder %s84, %s85
    %p99 = scmp.eq.s32.totalorder %s16, 3
    %p100 = por %p98, %p99
    %p102 = scmp.ne.s32.totalorder %s85, %s101
    %p103 = scmp.eq.s32.totalorder %s16, 0
    %p104 = por %p102, %p103
    %s105 = ssub.s32 %s17, %s29
    %p106 = scmp.eq.s32.totalorder %s105, 0
    %s108 = sadd.s32 %s107, 1
    %s109 = scalar_select %p106, %s107, %s108
    %p112 = pneg %p106
    %p113 = scmp.eq.s32.totalorder %s10, 3
    %p114 = por %p112, %p113
    %p115 = scmp.ne.s32.totalorder %s107, %s110
    %p116 = scmp.eq.s32.totalorder %s10, 0
    %p117 = por %p115, %p116
    %p118 = scmp.ne.s32.totalorder %s107, %s110
    %p119 = scmp.eq.s32.totalorder %s15, 3
    %p120 = por %p118, %p119
    %p121 = scmp.ne.s32.totalorder %s110, %s111
    %p122 = scmp.eq.s32.totalorder %s15, 0
    %p123 = por %p121, %p122
    %p124 = scmp.ne.s32.totalorder %s110, %s111
    %p125 = scmp.eq.s32.totalorder %s16, 3
    %p126 = por %p124, %p125
    %p128 = scmp.ne.s32.totalorder %s111, %s127
    %p129 = scmp.eq.s32.totalorder %s16, 0
    %p130 = por %p128, %p129
    %p131 = scmp.le.s32.totalorder 1, %s10
    %p132 = scmp.lt.s32.totalorder %s10, 5
    %p133 = pnand %p131, %p132
    %p134 = pneg %p133
    // Predicated region
    $region9: #{channelcat_forward.2} parent=5 // pred_check
      _
    $region10: #{channelcat_forward.2} parent=5 // pred_check_branch
      %136 = sbr.rel (%p133) target = $region12
    $region11: #{channelcat_forward.2} parent=5 // pred_region
      %s137 = ssub.s32 %s10, 1
      // Predicated region
      $region13: #{channelcat_forward.2} parent=11 // pred_check
        %p138 = pneg %p71
      $region14: #{channelcat_forward.2} parent=11 // pred_check_branch
        %140 = sbr.rel (%p138) target = $region16
      $region15: #{channelcat_forward.2} parent=11 // pred_region
        _
      $region16: #{channelcat_forward.2} parent=11 // pred_fallthru
        _
    $region12: #{channelcat_forward.2} parent=5 // pred_fallthru
      _
    %p141 = scmp.lt.s32.totalorder %s10, 4
    // Predicated region
    $region17: #{channelcat_forward.2} parent=5 // pred_check
      %p142 = pneg %p141
    $region18: #{channelcat_forward.2} parent=5 // pred_check_branch
      %144 = sbr.rel (%p142) target = $region20
    $region19: #{channelcat_forward.2} parent=5 // pred_region
      // Predicated region
      $region21: #{channelcat_forward.2} parent=19 // pred_check
        %p145 = pneg %p44
      $region22: #{channelcat_forward.2} parent=19 // pred_check_branch
        %147 = sbr.rel (%p145) target = $region24
      $region23: #{channelcat_forward.2} parent=19 // pred_region
        %p148 = scmp.lt.s32.totalorder %s17, 1
        %s149 = scalar_select %p148, %s17, 1
        %p150 = scmp.lt.s32.totalorder %s18, 1
        %s151 = scalar_select %p150, %s18, 1
        %s152 = smul.addr %s149, 2
        %s153 = sadd.s32 %s151, %s152
        %s154 = smul.addr %s153, 4
        %s155 = scalar_lea.vmem %s0, %s154
      $region24: #{channelcat_forward.2} parent=19 // pred_fallthru
        _
    $region20: #{channelcat_forward.2} parent=5 // pred_fallthru
      _
    %p156 = scmp.le.s32.totalorder 1, %s10
    %p157 = scmp.lt.s32.totalorder %s10, 5
    %p158 = pnand %p156, %p157
    %p159 = pneg %p158
    // Predicated region
    $region25: #{channelcat_forward.2} parent=5 // pred_check
      _
    $region26: #{channelcat_forward.2} parent=5 // pred_check_branch
      %161 = sbr.rel (%p158) target = $region28
    $region27: #{channelcat_forward.2} parent=5 // pred_region
      %s162 = ssub.s32 %s10, 1
      %p163 = scmp.lt.s32.totalorder %s19, 1
      %s164 = scalar_select %p163, %s19, 1
      %p165 = scmp.lt.s32.totalorder %s20, 1
      %s166 = scalar_select %p165, %s20, 1
      %s167 = smul.addr %s164, 2
      %s168 = sadd.s32 %s166, %s167
      %s169 = smul.addr %s168, 4
      %s170 = scalar_lea.vmem %s0, %s169
      %p171 = pneg %p50
      %p172 = pneg %p47
      %p173 = pneg %p71
      %p174 = pneg %p68
      %p175 = pneg %p97
      %p176 = pneg %p94
      %p177 = scmp.lt.s32.totalorder %s19, 1
      %s178 = scalar_select %p177, %s19, 1
      %s179 = smul.addr %s178, 8
      %s180 = scalar_lea.vmem %s2, %s179
      %p181 = pneg %p123
      %p182 = pneg %p120
      %p183 = scmp.lt.s32.totalorder %s19, 1
      %s184 = scalar_select %p183, %s19, 1
      %s185 = smul.addr %s184, 8
      %s186 = scalar_lea.vmem %s3, %s185
      %p187 = scmp.lt.s32.totalorder %s19, 1
      %s188 = scalar_select %p187, %s19, 1
      %p189 = scmp.lt.s32.totalorder %s20, 1
      %s190 = scalar_select %p189, %s20, 1
      %s191 = smul.addr %s188, 2
      %s192 = sadd.s32 %s190, %s191
      %s193 = smul.addr %s192, 4
      %s194 = scalar_lea.vmem %s0, %s193
      %p195 = scmp.lt.s32.totalorder %s19, 1
      %s196 = scalar_select %p195, %s19, 1
      %s197 = smul.addr %s196, 8
      %s198 = scalar_lea.vmem %s2, %s197
      %p199 = scmp.lt.s32.totalorder %s19, 1
      %s200 = scalar_select %p199, %s19, 1
      %s201 = smul.addr %s200, 8
      %s202 = scalar_lea.vmem %s3, %s201
      %p204 = scmp.eq.s32.totalorder %s20, 0
      // Predicated region
      $region29: #{channelcat_forward.2} parent=27 // pred_check
        %p205 = pneg %p204
      $region30: #{channelcat_forward.2} parent=27 // pred_check_branch
        %207 = sbr.rel (%p205) target = $region32
      $region31: #{channelcat_forward.2} parent=27 // pred_region
        %208 = vst [vmem:[%s198] sm:$0xff] 0.0
        %209 = vst [vmem:[%s202] sm:$0xff] 0.0
      $region32: #{channelcat_forward.2} parent=27 // pred_fallthru
        _
      %v210 = vld [vmem:[%s194] sm:$0xf]
      %v211 = vpack.c.bf16 %v210, %v210
      %v212 = vld [vmem:[%s1] sm:$0xf]
      %vm213 = vcmask 31744
      %v215 = vsel %vm213, %v212, 0
      %vm217 = vcmask 1041408
      %v219 = vsel %vm217, %v211, 0
      %221 = vmatprep.subr.bf16.mxu0 0
      %222 = vmatpush1.bf16.msra.mxu0 0
      %223 = vmatprep.subr.bf16.mxu0 0
      %224 = vmatpush1.bf16.msra.mxu0 0
      %225 = vmatprep.subr.bf16.mxu0 0
      %226 = vmatpush1.bf16.msra.mxu0 0
      %227 = vmatprep.subr.bf16.mxu0 0
      %228 = vmatpush1.bf16.msra.mxu0 0
      %229 = vmatprep.subr.bf16.mxu0 0
      %230 = vmatpush1.bf16.msra.mxu0 0
      %231 = vmatprep.subr.bf16.mxu0 0
      %232 = vmatpush1.bf16.msra.mxu0 0
      %233 = vmatprep.subr.bf16.mxu0 0
      %234 = vmatpush1.bf16.msra.mxu0 0
      %235 = vmatprep.subr.bf16.mxu0 0
      %236 = vmatpush1.bf16.msra.mxu0 %v219
      %237 = vmatprep.subr.bf16.mxu0 0
      %238 = vmatpush2.bf16.msra.mxu0 0
      %239 = vmatprep.subr.bf16.mxu0 0
      %240 = vmatpush2.bf16.msra.mxu0 0
      %241 = vmatprep.subr.bf16.mxu0 0
      %242 = vmatpush2.bf16.msra.mxu0 0
      %243 = vmatprep.subr.bf16.mxu0 0
      %244 = vmatpush2.bf16.msra.mxu0 0
      %245 = vmatprep.subr.bf16.mxu0 0
      %246 = vmatpush2.bf16.msra.mxu0 0
      %247 = vmatprep.subr.bf16.mxu0 0
      %248 = vmatpush2.bf16.msra.mxu0 0
      %249 = vmatprep.subr.bf16.mxu0 0
      %250 = vmatpush2.bf16.msra.mxu0 0
      %251 = vmatprep.subr.bf16.mxu0 0
      %252 = vmatpush2.bf16.msra.mxu0 0
      %253 = vmatprep.mubr.bf16.mxu0 0
      %254 = vmatmul.mubr.bf16.gmra.mxu0 %v215
      %v255 = vpop.f32.mrf.mxu0
      %v256 = vadd.f32 0.0, %v255
      %v257 = vpop.f32.mrf.mxu0
      %v258 = vpop.f32.mrf.mxu0
      %v259 = vpop.f32.mrf.mxu0
      %260 = vdwg.mxu0
      %v261 = vmul.f32 %v256, %v256
      %v262 = vld [vmem:[%s198] sm:$0xff]
      %v263 = vadd.f32 %v262, %v256
      %264 = vst [vmem:[%s198] sm:$0xff] %v263
      %v265 = vld [vmem:[%s202] sm:$0xff]
      %v266 = vadd.f32 %v265, %v261
      %267 = vst [vmem:[%s202] sm:$0xff] %v266
      %p268 = scmp.lt.s32.totalorder %s19, 1
      %s269 = scalar_select %p268, %s19, 1
      %s270 = smul.addr %s269, 8
      %s271 = scalar_lea.vmem %s2, %s270
      %p272 = scmp.lt.s32.totalorder %s19, 1
      %s273 = scalar_select %p272, %s19, 1
      %s274 = smul.addr %s273, 8
      %s275 = scalar_lea.vmem %s3, %s274
      // Predicated region
      $region33: #{channelcat_forward.2} parent=27 // pred_check
        %p276 = pneg %p94
      $region34: #{channelcat_forward.2} parent=27 // pred_check_branch
        %278 = sbr.rel (%p276) target = $region36
      $region35: #{channelcat_forward.2} parent=27 // pred_region
        _
      $region36: #{channelcat_forward.2} parent=27 // pred_fallthru
        _
      // Predicated region
      $region37: #{channelcat_forward.2} parent=27 // pred_check
        %p279 = pneg %p120
      $region38: #{channelcat_forward.2} parent=27 // pred_check_branch
        %281 = sbr.rel (%p279) target = $region40
      $region39: #{channelcat_forward.2} parent=27 // pred_region
        _
      $region40: #{channelcat_forward.2} parent=27 // pred_fallthru
        _
    $region28: #{channelcat_forward.2} parent=5 // pred_fallthru
      _
    %p282 = scmp.le.s32.totalorder 2, %s10
    // Predicated region
    $region41: #{channelcat_forward.2} parent=5 // pred_check
      %p283 = pneg %p282
    $region42: #{channelcat_forward.2} parent=5 // pred_check_branch
      %285 = sbr.rel (%p283) target = $region44
    $region43: #{channelcat_forward.2} parent=5 // pred_region
      %s286 = ssub.s32 %s10, 2
      // Predicated region
      $region45: #{channelcat_forward.2} parent=43 // pred_check
        %p287 = pneg %p100
      $region46: #{channelcat_forward.2} parent=43 // pred_check_branch
        %289 = sbr.rel (%p287) target = $region48
      $region47: #{channelcat_forward.2} parent=43 // pred_region
        %p290 = scmp.lt.s32.totalorder %s21, 1
        %s291 = scalar_select %p290, %s21, 1
        %s292 = smul.addr %s291, 8
        %s293 = scalar_lea.vmem %s2, %s292
      $region48: #{channelcat_forward.2} parent=43 // pred_fallthru
        _
      // Predicated region
      $region49: #{channelcat_forward.2} parent=43 // pred_check
        %p294 = pneg %p126
      $region50: #{channelcat_forward.2} parent=43 // pred_check_branch
        %296 = sbr.rel (%p294) target = $region52
      $region51: #{channelcat_forward.2} parent=43 // pred_region
        %p297 = scmp.lt.s32.totalorder %s21, 1
        %s298 = scalar_select %p297, %s21, 1
        %s299 = smul.addr %s298, 8
        %s300 = scalar_lea.vmem %s3, %s299
      $region52: #{channelcat_forward.2} parent=43 // pred_fallthru
        _
    $region44: #{channelcat_forward.2} parent=5 // pred_fallthru
      _
  $region6: #{channelcat_forward.2} parent=0 // loop_footer
    %s14 = sadd.s32 1, %s10
  $region7: #{channelcat_forward.2} parent=0 // loop_footer_branch
    %9 = sbr.rel target = $region3
  $region8: #{channelcat_forward.2} parent=0 // loop_exit
    _

// kernel: channelcat_forward.3
$region0: #{channelcat_forward.3}
  #allocation0 [shape = 'u32[]', space=smem, size = 0x4, offset = 0x4, fixed_abs, tag = 'smem constant byte address 0x4 - core index']
  #allocation1 [shape = 'u32[144,128]{1,0:T(1,128)}', space=vmem, size = 0x12000, scoped, tag = 'internal scratch']
  %s0 = inlined_call_operand.vmem [shape: f32[2,4,256], index: 0, kind: input, shape index: {}]
  %s1 = inlined_call_operand.vmem [shape: bf16[8,4], index: 1, kind: input, shape index: {}]
  %s2 = inlined_call_operand.vmem [shape: f32[8,1], index: 2, kind: input, shape index: {}]
  %s3 = inlined_call_operand.vmem [shape: f32[8,1], index: 3, kind: input, shape index: {}]
  %s4 = inlined_call_operand.vmem [shape: f32[2,8,256], index: 4, kind: output, shape index: {}]
  %s5 = sld [smem:[#allocation0]]
  $region49: #{channelcat_forward.3} parent=0
    _
  %s7 = ssub.s32 1, %s5
  %s8 = scalar_select 0, %s7, %s5
  loop: start=0, step=1, limit=6
  $region2: #{channelcat_forward.3} parent=0 // loop_pre_header
    _
  $region3: #{channelcat_forward.3} parent=0 // loop_header
    %s10 = sphi 0, %s14
    %p11 = scmp.ge.s32.totalorder %s10, 6
    %s17 = sphi 0, %s29
    %s18 = sphi 0, %s25
    %s19 = sphi 0, %s17
    %s20 = sphi 0, %s18
    %s21 = sphi 0, %s19
    %s22 = sphi 0, %s20
    %s34 = sphi 0, %s36
    %s37 = sphi 0, %s34
    %s38 = sphi 0, %s37
    %s54 = sphi 0, %s38
    %s58 = sphi 0, %s58
    %s60 = sphi 0, %s58
    %s61 = sphi 0, %s60
    %s75 = sphi 0, %s61
    %s79 = sphi 0, %s79
    %s81 = sphi 0, %s79
    %s82 = sphi 0, %s81
    %s96 = sphi 0, %s82
    %s100 = sphi 0, %s100
    %s102 = sphi 0, %s100
    %s103 = sphi 0, %s102
    %s117 = sphi 0, %s103
    %s125 = sphi 0, %s127
    %s128 = sphi 0, %s125
    %s129 = sphi 0, %s128
    %s145 = sphi 0, %s129
  $region4: #{channelcat_forward.3} parent=0 // loop_header_branch
    %13 = sbr.rel (%p11) target = $region8
  $region5: #{channelcat_forward.3} parent=0 // loop_body
    %s15 = ssub.s32 %s10, 1
    %s16 = ssub.s32 %s10, 2
    %s23 = sadd.s32 1, %s18
    %p24 = scmp.ge.s32.totalorder %s23, 2
    %s25 = scalar_select %p24, 0, %s23
    %s26 = sadd.s32 1, %s17
    %s27 = scalar_select %p24, %s26, %s17
    %p28 = scmp.ge.s32.totalorder %s27, 2
    %s29 = scalar_select %p28, 0, %s27
    %s30 = ssub.s32 %s17, %s29
    %s31 = ssub.s32 %s18, %s25
    %s32 = sor.u32 %s30, %s31
    %p33 = scmp.eq.s32.totalorder %s32, 0
    %s35 = sadd.s32 %s34, 1
    %s36 = scalar_select %p33, %s34, %s35
    %p39 = pneg %p33
    %p40 = scmp.eq.s32.totalorder %s10, 3
    %p41 = por %p39, %p40
    %p42 = scmp.ne.s32.totalorder %s34, %s37
    %p43 = scmp.eq.s32.totalorder %s10, 0
    %p44 = por %p42, %p43
    %p45 = scmp.ne.s32.totalorder %s34, %s37
    %p46 = scmp.eq.s32.totalorder %s15, 3
    %p47 = por %p45, %p46
    %p48 = scmp.ne.s32.totalorder %s37, %s38
    %p49 = scmp.eq.s32.totalorder %s15, 0
    %p50 = por %p48, %p49
    %p51 = scmp.ne.s32.totalorder %s37, %s38
    %p52 = scmp.eq.s32.totalorder %s16, 3
    %p53 = por %p51, %p52
    %p55 = scmp.ne.s32.totalorder %s38, %s54
    %p56 = scmp.eq.s32.totalorder %s16, 0
    %p57 = por %p55, %p56
    %s59 = sadd.s32 %s58, 1
    %p62 = scmp.eq.s32.totalorder %s10, 3
    %p63 = scmp.ne.s32.totalorder %s58, %s60
    %p64 = scmp.eq.s32.totalorder %s10, 0
    %p65 = por %p63, %p64
    %p66 = scmp.ne.s32.totalorder %s58, %s60
    %p67 = scmp.eq.s32.totalorder %s15, 3
    %p68 = por %p66, %p67
    %p69 = scmp.ne.s32.totalorder %s60, %s61
    %p70 = scmp.eq.s32.totalorder %s15, 0
    %p71 = por %p69, %p70
    %p72 = scmp.ne.s32.totalorder %s60, %s61
    %p73 = scmp.eq.s32.totalorder %s16, 3
    %p74 = por %p72, %p73
    %p76 = scmp.ne.s32.totalorder %s61, %s75
    %p77 = scmp.eq.s32.totalorder %s16, 0
    %p78 = por %p76, %p77
    %s80 = sadd.s32 %s79, 1
    %p83 = scmp.eq.s32.totalorder %s10, 3
    %p84 = scmp.ne.s32.totalorder %s79, %s81
    %p85 = scmp.eq.s32.totalorder %s10, 0
    %p86 = por %p84, %p85
    %p87 = scmp.ne.s32.totalorder %s79, %s81
    %p88 = scmp.eq.s32.totalorder %s15, 3
    %p89 = por %p87, %p88
    %p90 = scmp.ne.s32.totalorder %s81, %s82
    %p91 = scmp.eq.s32.totalorder %s15, 0
    %p92 = por %p90, %p91
    %p93 = scmp.ne.s32.totalorder %s81, %s82
    %p94 = scmp.eq.s32.totalorder %s16, 3
    %p95 = por %p93, %p94
    %p97 = scmp.ne.s32.totalorder %s82, %s96
    %p98 = scmp.eq.s32.totalorder %s16, 0
    %p99 = por %p97, %p98
    %s101 = sadd.s32 %s100, 1
    %p104 = scmp.eq.s32.totalorder %s10, 3
    %p105 = scmp.ne.s32.totalorder %s100, %s102
    %p106 = scmp.eq.s32.totalorder %s10, 0
    %p107 = por %p105, %p106
    %p108 = scmp.ne.s32.totalorder %s100, %s102
    %p109 = scmp.eq.s32.totalorder %s15, 3
    %p110 = por %p108, %p109
    %p111 = scmp.ne.s32.totalorder %s102, %s103
    %p112 = scmp.eq.s32.totalorder %s15, 0
    %p113 = por %p111, %p112
    %p114 = scmp.ne.s32.totalorder %s102, %s103
    %p115 = scmp.eq.s32.totalorder %s16, 3
    %p116 = por %p114, %p115
    %p118 = scmp.ne.s32.totalorder %s103, %s117
    %p119 = scmp.eq.s32.totalorder %s16, 0
    %p120 = por %p118, %p119
    %s121 = ssub.s32 %s17, %s29
    %s122 = ssub.s32 %s18, %s25
    %s123 = sor.u32 %s121, %s122
    %p124 = scmp.eq.s32.totalorder %s123, 0
    %s126 = sadd.s32 %s125, 1
    %s127 = scalar_select %p124, %s125, %s126
    %p130 = pneg %p124
    %p131 = scmp.eq.s32.totalorder %s10, 3
    %p132 = por %p130, %p131
    %p133 = scmp.ne.s32.totalorder %s125, %s128
    %p134 = scmp.eq.s32.totalorder %s10, 0
    %p135 = por %p133, %p134
    %p136 = scmp.ne.s32.totalorder %s125, %s128
    %p137 = scmp.eq.s32.totalorder %s15, 3
    %p138 = por %p136, %p137
    %p139 = scmp.ne.s32.totalorder %s128, %s129
    %p140 = scmp.eq.s32.totalorder %s15, 0
    %p141 = por %p139, %p140
    %p142 = scmp.ne.s32.totalorder %s128, %s129
    %p143 = scmp.eq.s32.totalorder %s16, 3
    %p144 = por %p142, %p143
    %p146 = scmp.ne.s32.totalorder %s129, %s145
    %p147 = scmp.eq.s32.totalorder %s16, 0
    %p148 = por %p146, %p147
    %p149 = scmp.le.s32.totalorder 1, %s10
    %p150 = scmp.lt.s32.totalorder %s10, 5
    %p151 = pnand %p149, %p150
    %p152 = pneg %p151
    // Predicated region
    $region9: #{channelcat_forward.3} parent=5 // pred_check
      _
    $region10: #{channelcat_forward.3} parent=5 // pred_check_branch
      %154 = sbr.rel (%p151) target = $region12
    $region11: #{channelcat_forward.3} parent=5 // pred_region
      %s155 = ssub.s32 %s10, 1
      // Predicated region
      $region13: #{channelcat_forward.3} parent=11 // pred_check
        %p156 = pneg %p71
      $region14: #{channelcat_forward.3} parent=11 // pred_check_branch
        %158 = sbr.rel (%p156) target = $region16
      $region15: #{channelcat_forward.3} parent=11 // pred_region
        _
      $region16: #{channelcat_forward.3} parent=11 // pred_fallthru
        _
      // Predicated region
      $region17: #{channelcat_forward.3} parent=11 // pred_check
        %p159 = pneg %p92
      $region18: #{channelcat_forward.3} parent=11 // pred_check_branch
        %161 = sbr.rel (%p159) target = $region20
      $region19: #{channelcat_forward.3} parent=11 // pred_region
        _
      $region20: #{channelcat_forward.3} parent=11 // pred_fallthru
        _
      // Predicated region
      $region21: #{channelcat_forward.3} parent=11 // pred_check
        %p162 = pneg %p113
      $region22: #{channelcat_forward.3} parent=11 // pred_check_branch
        %164 = sbr.rel (%p162) target = $region24
      $region23: #{channelcat_forward.3} parent=11 // pred_region
        _
      $region24: #{channelcat_forward.3} parent=11 // pred_fallthru
        _
    $region12: #{channelcat_forward.3} parent=5 // pred_fallthru
      _
    %p165 = scmp.lt.s32.totalorder %s10, 4
    // Predicated region
    $region25: #{channelcat_forward.3} parent=5 // pred_check
      %p166 = pneg %p165
    $region26: #{channelcat_forward.3} parent=5 // pred_check_branch
      %168 = sbr.rel (%p166) target = $region28
    $region27: #{channelcat_forward.3} parent=5 // pred_region
      // Predicated region
      $region29: #{channelcat_forward.3} parent=27 // pred_check
        %p169 = pneg %p44
      $region30: #{channelcat_forward.3} parent=27 // pred_check_branch
        %171 = sbr.rel (%p169) target = $region32
      $region31: #{channelcat_forward.3} parent=27 // pred_region
        %p172 = scmp.lt.s32.totalorder %s17, 1
        %s173 = scalar_select %p172, %s17, 1
        %p174 = scmp.lt.s32.totalorder %s18, 1
        %s175 = scalar_select %p174, %s18, 1
        %s176 = smul.addr %s173, 2
        %s177 = sadd.s32 %s175, %s176
        %s178 = smul.addr %s177, 4
        %s179 = scalar_lea.vmem %s0, %s178
      $region32: #{channelcat_forward.3} parent=27 // pred_fallthru
        _
    $region28: #{channelcat_forward.3} parent=5 // pred_fallthru
      _
    %p180 = scmp.le.s32.totalorder 1, %s10
    %p181 = scmp.lt.s32.totalorder %s10, 5
    %p182 = pnand %p180, %p181
    %p183 = pneg %p182
    // Predicated region
    $region33: #{channelcat_forward.3} parent=5 // pred_check
      _
    $region34: #{channelcat_forward.3} parent=5 // pred_check_branch
      %185 = sbr.rel (%p182) target = $region36
    $region35: #{channelcat_forward.3} parent=5 // pred_region
      %s186 = ssub.s32 %s10, 1
      %p187 = scmp.lt.s32.totalorder %s19, 1
      %s188 = scalar_select %p187, %s19, 1
      %p189 = scmp.lt.s32.totalorder %s20, 1
      %s190 = scalar_select %p189, %s20, 1
      %s191 = smul.addr %s188, 2
      %s192 = sadd.s32 %s190, %s191
      %s193 = smul.addr %s192, 4
      %s194 = scalar_lea.vmem %s0, %s193
      %p195 = pneg %p50
      %p196 = pneg %p47
      %p197 = pneg %p71
      %p198 = pneg %p68
      %p199 = pneg %p92
      %p200 = pneg %p89
      %p201 = pneg %p113
      %p202 = pneg %p110
      %p203 = pneg %p141
      %p204 = pneg %p138
      %p205 = scmp.lt.s32.totalorder %s19, 1
      %s206 = scalar_select %p205, %s19, 1
      %p207 = scmp.lt.s32.totalorder %s20, 1
      %s208 = scalar_select %p207, %s20, 1
      %s209 = smul.addr %s206, 2
      %s210 = sadd.s32 %s208, %s209
      %s211 = smul.addr %s210, 8
      %s212 = scalar_lea.vmem %s4, %s211
      %p213 = scmp.lt.s32.totalorder %s19, 1
      %s214 = scalar_select %p213, %s19, 1
      %p215 = scmp.lt.s32.totalorder %s20, 1
      %s216 = scalar_select %p215, %s20, 1
      %s217 = smul.addr %s214, 2
      %s218 = sadd.s32 %s216, %s217
      %s219 = smul.addr %s218, 4
      %s220 = scalar_lea.vmem %s0, %s219
      %p221 = scmp.lt.s32.totalorder %s19, 1
      %s222 = scalar_select %p221, %s19, 1
      %p223 = scmp.lt.s32.totalorder %s20, 1
      %s224 = scalar_select %p223, %s20, 1
      %s225 = smul.addr %s222, 2
      %s226 = sadd.s32 %s224, %s225
      %s227 = smul.addr %s226, 8
      %s228 = scalar_lea.vmem %s4, %s227
      %v230 = vld [vmem:[%s220] sm:$0xf]
      %v231 = vpack.c.bf16 %v230, %v230
      %v232 = vld [vmem:[%s1] sm:$0xf]
      %vm233 = vcmask 31744
      %v235 = vsel %vm233, %v232, 0
      %vm237 = vcmask 1041408
      %v239 = vsel %vm237, %v231, 0
      %241 = vmatprep.subr.bf16.mxu0 0
      %242 = vmatpush1.bf16.msra.mxu0 0
      %243 = vmatprep.subr.bf16.mxu0 0
      %244 = vmatpush1.bf16.msra.mxu0 0
      %245 = vmatprep.subr.bf16.mxu0 0
      %246 = vmatpush1.bf16.msra.mxu0 0
      %247 = vmatprep.subr.bf16.mxu0 0
      %248 = vmatpush1.bf16.msra.mxu0 0
      %249 = vmatprep.subr.bf16.mxu0 0
      %250 = vmatpush1.bf16.msra.mxu0 0
      %251 = vmatprep.subr.bf16.mxu0 0
      %252 = vmatpush1.bf16.msra.mxu0 0
      %253 = vmatprep.subr.bf16.mxu0 0
      %254 = vmatpush1.bf16.msra.mxu0 0
      %255 = vmatprep.subr.bf16.mxu0 0
      %256 = vmatpush1.bf16.msra.mxu0 %v239
      %257 = vmatprep.subr.bf16.mxu0 0
      %258 = vmatpush2.bf16.msra.mxu0 0
      %259 = vmatprep.subr.bf16.mxu0 0
      %260 = vmatpush2.bf16.msra.mxu0 0
      %261 = vmatprep.subr.bf16.mxu0 0
      %262 = vmatpush2.bf16.msra.mxu0 0
      %263 = vmatprep.subr.bf16.mxu0 0
      %264 = vmatpush2.bf16.msra.mxu0 0
      %265 = vmatprep.subr.bf16.mxu0 0
      %266 = vmatpush2.bf16.msra.mxu0 0
      %267 = vmatprep.subr.bf16.mxu0 0
      %268 = vmatpush2.bf16.msra.mxu0 0
      %269 = vmatprep.subr.bf16.mxu0 0
      %270 = vmatpush2.bf16.msra.mxu0 0
      %271 = vmatprep.subr.bf16.mxu0 0
      %272 = vmatpush2.bf16.msra.mxu0 0
      %273 = vmatprep.mubr.bf16.mxu0 0
      %274 = vmatmul.mubr.bf16.gmra.mxu0 %v235
      %v275 = vpop.f32.mrf.mxu0
      %v276 = vadd.f32 0.0, %v275
      %v277 = vpop.f32.mrf.mxu0
      %v278 = vpop.f32.mrf.mxu0
      %v279 = vpop.f32.mrf.mxu0
      %280 = vdwg.mxu0
      %v281 = vld [vmem:[%s2] sm:$0xff]
      %283 = vset.pattern.permute.xlu0 0
      %284 = vperm.xlu0 %283, %v281
      %v285 = vpop.permute.xlu0 %284
      %v287 = vmul.f32 %v276, %v285
      %v288 = vld [vmem:[%s3] sm:$0xff]
      %290 = vset.pattern.permute.xlu0 0
      %291 = vperm.xlu0 %290, %v288
      %v292 = vpop.permute.xlu0 %291
      %v294 = vadd.f32 %v287, %v292
      %295 = vst [vmem:[%s228] sm:$0xff] %v294
      %p296 = scmp.lt.s32.totalorder %s19, 1
      %s297 = scalar_select %p296, %s19, 1
      %p298 = scmp.lt.s32.totalorder %s20, 1
      %s299 = scalar_select %p298, %s20, 1
      %s300 = smul.addr %s297, 2
      %s301 = sadd.s32 %s299, %s300
      %s302 = smul.addr %s301, 8
      %s303 = scalar_lea.vmem %s4, %s302
      // Predicated region
      $region37: #{channelcat_forward.3} parent=35 // pred_check
        %p304 = pneg %p138
      $region38: #{channelcat_forward.3} parent=35 // pred_check_branch
        %306 = sbr.rel (%p304) target = $region40
      $region39: #{channelcat_forward.3} parent=35 // pred_region
        _
      $region40: #{channelcat_forward.3} parent=35 // pred_fallthru
        _
    $region36: #{channelcat_forward.3} parent=5 // pred_fallthru
      _
    %p307 = scmp.le.s32.totalorder 2, %s10
    // Predicated region
    $region41: #{channelcat_forward.3} parent=5 // pred_check
      %p308 = pneg %p307
    $region42: #{channelcat_forward.3} parent=5 // pred_check_branch
      %310 = sbr.rel (%p308) target = $region44
    $region43: #{channelcat_forward.3} parent=5 // pred_region
      %s311 = ssub.s32 %s10, 2
      // Predicated region
      $region45: #{channelcat_forward.3} parent=43 // pred_check
        %p312 = pneg %p144
      $region46: #{channelcat_forward.3} parent=43 // pred_check_branch
        %314 = sbr.rel (%p312) target = $region48
      $region47: #{channelcat_forward.3} parent=43 // pred_region
        %p315 = scmp.lt.s32.totalorder %s21, 1
        %s316 = scalar_select %p315, %s21, 1
        %p317 = scmp.lt.s32.totalorder %s22, 1
        %s318 = scalar_select %p317, %s22, 1
        %s319 = smul.addr %s316, 2
        %s320 = sadd.s32 %s318, %s319
        %s321 = smul.addr %s320, 8
        %s322 = scalar_lea.vmem %s4, %s321
      $region48: #{channelcat_forward.3} parent=43 // pred_fallthru
        _
    $region44: #{channelcat_forward.3} parent=5 // pred_fallthru
      _
  $region6: #{channelcat_forward.3} parent=0 // loop_footer
    %s14 = sadd.s32 1, %s10
  $region7: #{channelcat_forward.3} parent=0 // loop_footer_branch
    %9 = sbr.rel target = $region3
  $region8: #{channelcat_forward.3} parent=0 // loop_exit
    _

</llo_original>
